<compile_context>
chip_gen: v7x
topology: tpu7x:2x2x1
jax: 0.10.0
libtpu: 0.0.40
codegen_flags: <defaults>
</compile_context>

<pallas_src>
import jax
import jax.numpy as jnp
import numpy as np
from jax import lax
from jax.experimental import pallas as pl
from jax.experimental.pallas import tpu as pltpu


C1 = 128                 # conv1 output channels
K1, S1, P1 = 3, 2, 1     # conv1 kernel / stride / pad
K2, S2, P2 = 9, 8, 4     # conv2 kernel / stride / pad
BN_EPS = 1e-5
LRELU_SLOPE = 0.2


def _round_up(n, m):
    return ((n + m - 1) // m) * m


def _pick_row_tile(rows):
    """Largest row tile up to 2048; last tile is handled by zero-row padding."""
    for cand in (2048, 1024, 512, 256, 128, 64, 32, 16):
        if cand <= rows:
            return cand
    return 16


# ----------------------------- Pallas kernels ------------------------------

def conv1_stats_kernel(p_ref, w_ref, y_ref, s_ref, sq_ref):
    """One row tile of conv1 (im2col matmul, bf16 in / f32 acc) + BN partials.

    p: (tm, kdim) bf16   w: (kdim, C1) bf16
    y: (tm, C1) bf16     s, sq: (1, 8, C1) f32 per-step partial sums.
    No conv1 bias: training-mode BatchNorm cancels it exactly, and the padded
    (all-zero) rows of the last tile then contribute exactly 0 to the stats.
    """
    y = jnp.dot(p_ref[...], w_ref[...], preferred_element_type=jnp.float32)
    y_ref[...] = y.astype(y_ref.dtype)                 # bf16 writeback

    tm, c = y.shape
    yg = y.reshape(tm // 8, 8, c)                      # free leading-dim split
    s_ref[...] = jnp.sum(yg, axis=0)[None]             # (1, 8, C1) unmasked store
    sq_ref[...] = jnp.sum(yg * yg, axis=0)[None]


def make_conv2_kernel(H1, W1, H2, W2):
    """BN affine + LeakyReLU + 1-output-channel conv2 as a VPU reduction.

    One grid step = one batch element; y1 (bf16) for that element stays
    VMEM-resident, is upcast to f32 in-register, and the 9x9 stride-8 windows
    are gathered with static slices (padding taps skipped statically: padding
    of the zero-padded post-activation map contributes exactly zero, matching
    PyTorch).  Per-channel partial sums for all output positions are
    accumulated locally and stored with ONE dense (H2*W2, C1) write.
    """

    def kernel(y_ref, scale_ref, shift_ref, w2_ref, o_ref):
        c = y_ref.shape[-1]
        scale = scale_ref[...].reshape(1, 1, c)
        shift = shift_ref[...].reshape(1, 1, c)
        ya = y_ref[0].astype(jnp.float32) * scale + shift   # BN affine, f32 math
        ya = jnp.where(ya > 0, ya, LRELU_SLOPE * ya)        # LeakyReLU(0.2)
        w2 = w2_ref[...]

        rows = []
        for i in range(H2):
            for j in range(W2):
                h0 = i * S2 - P2
                w0 = j * S2 - P2
                hs, he = max(h0, 0), min(h0 + K2, H1)
                ws, we = max(w0, 0), min(w0 + K2, W1)
                win = ya[hs:he, ws:we, :]                       # (kh, kw, C1)
                tap = w2[hs - h0:he - h0, ws - w0:we - w0, :]   # matching taps
                prod = win * tap
                pcs = jnp.sum(jnp.sum(prod, axis=0), axis=0, keepdims=True)
                rows.append(pcs)                                # (1, C1)
        o_ref[...] = jnp.concatenate(rows, axis=0)[None, :, :]  # single dense store

    return kernel


# ------------------------------ JAX glue ------------------------------------

def _im2col_conv1(x_nhwc, Ho, Wo, rows_pad):
    """3x3 / stride-2 / pad-1 patches at natural width (kdim = 9*Cin), bf16."""
    N, H, W, Cin = x_nhwc.shape
    kdim = K1 * K1 * Cin
    xp = jnp.pad(x_nhwc, ((0, 0), (P1, P1), (P1, P1), (0, 0)))
    cols = []
    for ky in range(K1):
        for kx in range(K1):
            cols.append(xp[:, ky:ky + S1 * Ho:S1, kx:kx + S1 * Wo:S1, :])
    patches = jnp.stack(cols, axis=3).reshape(N * Ho * Wo, kdim)
    rows = N * Ho * Wo
    if rows_pad > rows:                       # zero rows: exactly 0 in stats
        patches = jnp.pad(patches, ((0, rows_pad - rows), (0, 0)))
    return patches.astype(jnp.bfloat16)


def prepare_params(w1, gamma, beta, w2, b2):
    """One-time parameter packing, hoisted out of the forward path.

    Note: the conv1 bias is intentionally NOT packed -- training-mode
    BatchNorm's per-channel mean subtraction cancels it exactly.
    """
    kh, kw, cin, c1 = w1.shape
    kdim = kh * kw * cin
    return dict(
        w1=w1.reshape(kdim, c1).astype(jnp.bfloat16),      # (kdim, C1) bf16
        gamma=gamma.astype(jnp.float32),                   # (C1,)
        beta=beta.astype(jnp.float32),                     # (C1,)
        w2=w2.reshape(K2, K2, c1).astype(jnp.float32),     # HWIO, O=1 squeezed
        b2=jnp.asarray(b2, jnp.float32).reshape(()),
    )


def qrgan_discriminator_forward(x_nchw, p):
    """Forward pass. x_nchw: (N, Cin, H, W). Returns (N, 1, H//16, W//16)."""
    N, Cin, H, W = x_nchw.shape
    kdim, c1 = p["w1"].shape

    x = jnp.transpose(x_nchw, (0, 2, 3, 1)).astype(jnp.float32)   # NHWC

    # ---- kernel 1: conv1 matmul (row tiled) + BN batch statistic partials ----
    H1 = (H + 2 * P1 - K1) // S1 + 1
    W1 = (W + 2 * P1 - K1) // S1 + 1
    R1 = N * H1 * W1
    tm = _pick_row_tile(R1)
    R1p = _round_up(R1, tm)
    G = R1p // tm

    patches = _im2col_conv1(x, H1, W1, R1p)        # (R1p, kdim) bf16, no lane pad

    flops1 = 2 * R1p * kdim * c1 + 3 * R1p * c1
    bytes1 = R1p * kdim * 2 + kdim * c1 * 2 + R1p * c1 * 2 + 2 * G * 8 * c1 * 4
    y1_flat, s_part, sq_part = pl.pallas_call(
        conv1_stats_kernel,
        grid=(G,),
        in_specs=[
            pl.BlockSpec((tm, kdim), lambda r: (r, 0)),
            pl.BlockSpec((kdim, c1), lambda r: (0, 0)),
        ],
        out_specs=[
            pl.BlockSpec((tm, c1), lambda r: (r, 0)),
            pl.BlockSpec((1, 8, c1), lambda r: (r, 0, 0)),   # partial sums
            pl.BlockSpec((1, 8, c1), lambda r: (r, 0, 0)),   # partial sumsq
        ],
        out_shape=[
            jax.ShapeDtypeStruct((R1p, c1), jnp.bfloat16),
            jax.ShapeDtypeStruct((G, 8, c1), jnp.float32),
            jax.ShapeDtypeStruct((G, 8, c1), jnp.float32),
        ],
        compiler_params=pltpu.CompilerParams(
            dimension_semantics=("parallel",),               # no carried accumulator
            vmem_limit_bytes=32 * 1024 * 1024,
        ),
        cost_estimate=pl.CostEstimate(
            flops=flops1, transcendentals=0, bytes_accessed=bytes1),
    )(patches, p["w1"])

    # ---- fold training-mode BatchNorm into a per-channel scale / shift ----
    # (bias-free mean; conv1 bias cancels exactly under BN; var clamped >= 0)
    mean = jnp.sum(s_part, axis=(0, 1)) / R1
    var = jnp.maximum(jnp.sum(sq_part, axis=(0, 1)) / R1 - mean * mean, 0.0)
    scale = p["gamma"] * lax.rsqrt(var + BN_EPS)
    shift = p["beta"] - mean * scale
    scale = scale.reshape(1, c1)
    shift = shift.reshape(1, c1)

    # ---- kernel 2: BN affine + LeakyReLU + conv2 (Cout=1) as a reduction ----
    H2 = (H1 + 2 * P2 - K2) // S2 + 1
    W2 = (W1 + 2 * P2 - K2) // S2 + 1
    y1 = y1_flat[:R1].reshape(N, H1, W1, c1)                 # bf16

    flops2 = N * (4 * H1 * W1 * c1 + 2 * H2 * W2 * K2 * K2 * c1)
    bytes2 = R1 * c1 * 2 + (2 * c1 + K2 * K2 * c1 + N * H2 * W2 * c1) * 4
    psum = pl.pallas_call(
        make_conv2_kernel(H1, W1, H2, W2),
        grid=(N,),
        in_specs=[
            pl.BlockSpec((1, H1, W1, c1), lambda n: (n, 0, 0, 0)),
            pl.BlockSpec((1, c1), lambda n: (0, 0)),
            pl.BlockSpec((1, c1), lambda n: (0, 0)),
            pl.BlockSpec((K2, K2, c1), lambda n: (0, 0, 0)),
        ],
        out_specs=pl.BlockSpec((1, H2 * W2, c1), lambda n: (n, 0, 0)),
        out_shape=jax.ShapeDtypeStruct((N, H2 * W2, c1), jnp.float32),
        compiler_params=pltpu.CompilerParams(
            dimension_semantics=("parallel",),               # batches independent
            vmem_limit_bytes=32 * 1024 * 1024,
        ),
        cost_estimate=pl.CostEstimate(
            flops=flops2, transcendentals=0, bytes_accessed=bytes2),
    )(y1, scale, shift, p["w2"])

    out = jnp.sum(psum, axis=-1) + p["b2"]                   # (N, H2*W2)
    return out.reshape(N, 1, H2, W2)                         # NCHW


# ------------------------------ reference -----------------------------------

def reference_forward(x_nchw, w1, b1, gamma, beta, w2, b2,
                      quantize_like_kernel=False):
    """Pure-JAX (XLA conv) equivalent of the PyTorch module forward.

    quantize_like_kernel=True mirrors the kernel's numerics exactly:
    bf16-rounded conv1 operands, bias cancelled by training-mode BN, and the
    conv1 output stored in bf16 before the folded BN affine.
    """
    x = jnp.transpose(x_nchw, (0, 2, 3, 1)).astype(jnp.float32)
    dn = ("NHWC", "HWIO", "NHWC")
    hp = lax.Precision.HIGHEST
    if quantize_like_kernel:
        xq = x.astype(jnp.bfloat16).astype(jnp.float32)
        w1q = w1.astype(jnp.bfloat16).astype(jnp.float32)
        y0 = lax.conv_general_dilated(xq, w1q, (S1, S1), ((P1, P1), (P1, P1)),
                                      dimension_numbers=dn, precision=hp)
        mean0 = jnp.mean(y0, axis=(0, 1, 2))
        var0 = jnp.mean((y0 - mean0) ** 2, axis=(0, 1, 2))
        scale = gamma * lax.rsqrt(var0 + BN_EPS)
        shift = beta - mean0 * scale            # b1 cancels exactly under BN
        y = y0.astype(jnp.bfloat16).astype(jnp.float32) * scale + shift
    else:
        y = lax.conv_general_dilated(x, w1, (S1, S1), ((P1, P1), (P1, P1)),
                                     dimension_numbers=dn, precision=hp) + b1
        mean = jnp.mean(y, axis=(0, 1, 2), keepdims=True)
        var = jnp.mean((y - mean) ** 2, axis=(0, 1, 2), keepdims=True)
        y = (y - mean) * lax.rsqrt(var + BN_EPS) * gamma + beta
    y = jnp.where(y > 0, y, LRELU_SLOPE * y)
    out = lax.conv_general_dilated(y, w2, (S2, S2), ((P2, P2), (P2, P2)),
                                   dimension_numbers=dn, precision=hp) + b2
    return jnp.transpose(out, (0, 3, 1, 2))


# --------------------------------- main --------------------------------------

if __name__ == "__main__":
    N, Cin, H, W = 2, 4, 16, 16        # input_shape = (4, 16, 16), batch of 2

    key = jax.random.PRNGKey(0)
    k1, k2, k3, k4, k5, k6, kx = jax.random.split(key, 7)

    # Deterministic synthetic parameters (HWIO conv weight layout).
    w1 = jax.random.normal(k1, (K1, K1, Cin, C1), jnp.float32) * 0.1
    b1 = jax.random.normal(k2, (C1,), jnp.float32) * 0.1
    gamma = 1.0 + 0.1 * jax.random.normal(k3, (C1,), jnp.float32)
    beta = 0.1 * jax.random.normal(k4, (C1,), jnp.float32)
    w2 = jax.random.normal(k5, (K2, K2, C1, 1), jnp.float32) * 0.02
    b2 = jax.random.normal(k6, (1,), jnp.float32) * 0.1

    x = jax.random.normal(kx, (N, Cin, H, W), jnp.float32)   # NCHW like PyTorch

    packed = prepare_params(w1, gamma, beta, w2, b2)         # hoisted, one-time
    fwd = jax.jit(qrgan_discriminator_forward)
    out = jax.block_until_ready(fwd(x, packed))
    assert out.shape == (N, 1, H // 16, W // 16), out.shape

    # Structural check: reference modeling the kernel's quantization exactly
    # (bf16 conv1 operands + bf16 y1 storage, f32 everything else).
    ref_q = jax.block_until_ready(
        reference_forward(x, w1, b1, gamma, beta, w2, b2,
                          quantize_like_kernel=True))
    np.testing.assert_allclose(np.asarray(out), np.asarray(ref_q),
                               rtol=2e-3, atol=2e-3)

    # End-to-end check vs. the full-f32 PyTorch-equivalent forward; tolerance
    # accounts for bf16 conv1 operands and the bf16 y1 intermediate (f32
    # accumulation throughout) -- acceptable for a GAN discriminator.
    ref = jax.block_until_ready(
        reference_forward(x, w1, b1, gamma, beta, w2, b2))
    np.testing.assert_allclose(np.asarray(out), np.asarray(ref),
                               rtol=5e-2, atol=5e-2)

    print("KERNEL_OK")
</pallas_src>

<mosaic_0001>
module attributes {stable_mosaic.version = 11 : i64} {
  func.func @conv1_stats_kernel(%arg0: i32, %arg1: memref<128x36xbf16, #tpu.memory_space<vmem>>, %arg2: memref<36x128xbf16, #tpu.memory_space<vmem>>, %arg3: memref<128x128xbf16, #tpu.memory_space<vmem>>, %arg4: memref<1x8x128xf32, #tpu.memory_space<vmem>>, %arg5: memref<1x8x128xf32, #tpu.memory_space<vmem>>) attributes {dimension_semantics = [#tpu.dimension_semantics<parallel>], iteration_bounds = array<i64: 1>, scalar_prefetch = 0 : i64, scratch_operands = 0 : i64, tpu.core_type = #tpu.core_type<tc>, window_params = [{transform_indices = @transform_0, window_bounds = array<i64: 128, 36>}, {pipeline_mode = #tpu.pipeline_mode<synchronous>, transform_indices = @transform_1, window_bounds = array<i64: 36, 128>}, {transform_indices = @transform_2, window_bounds = array<i64: 128, 128>}, {transform_indices = @transform_3, window_bounds = array<i64: 1, 8, 128>}, {transform_indices = @transform_4, window_bounds = array<i64: 1, 8, 128>}]} {
    %c0 = arith.constant 0 : index
    %c0_0 = arith.constant 0 : index
    %0 = vector.load %arg1[%c0, %c0_0] : memref<128x36xbf16, #tpu.memory_space<vmem>>, vector<128x36xbf16>
    %c0_1 = arith.constant 0 : index
    %c0_2 = arith.constant 0 : index
    %1 = vector.load %arg2[%c0_1, %c0_2] : memref<36x128xbf16, #tpu.memory_space<vmem>>, vector<36x128xbf16>
    %cst = arith.constant dense<0.000000e+00> : vector<128x128xf32>
    %2 = tpu.matmul %0, %1, %cst {dimension_numbers = #tpu.dot_dimension_numbers<[1], [0], [0], [1], [0, 0, 1, 1], [], []>} : vector<128x36xbf16>, vector<36x128xbf16>, vector<128x128xf32> -> vector<128x128xf32>
    %3 = arith.truncf %2 : vector<128x128xf32> to vector<128x128xbf16>
    %c0_3 = arith.constant 0 : index
    %c0_4 = arith.constant 0 : index
    %4 = vector.load %arg3[%c0_3, %c0_4] : memref<128x128xbf16, #tpu.memory_space<vmem>>, vector<128x128xbf16>
    tpu.vector_store %arg3[%c0_3, %c0_4], %3 {strides = array<i32>} : memref<128x128xbf16, #tpu.memory_space<vmem>>, vector<128x128xbf16>,
    %5 = vector.shape_cast %2 : vector<128x128xf32> to vector<16x8x128xf32>
    %cst_5 = arith.constant dense<0.000000e+00> : vector<8x128xf32>
    %6 = vector.multi_reduction <add>, %5, %cst_5 [0] : vector<16x8x128xf32> to vector<8x128xf32>
    %7 = vector.shape_cast %6 : vector<8x128xf32> to vector<1x8x128xf32>
    %c0_6 = arith.constant 0 : index
    %c0_7 = arith.constant 0 : index
    %c0_8 = arith.constant 0 : index
    %8 = vector.load %arg4[%c0_6, %c0_7, %c0_8] : memref<1x8x128xf32, #tpu.memory_space<vmem>>, vector<1x8x128xf32>
    tpu.vector_store %arg4[%c0_6, %c0_7, %c0_8], %7 {strides = array<i32>} : memref<1x8x128xf32, #tpu.memory_space<vmem>>, vector<1x8x128xf32>,
    %9 = arith.mulf %5, %5 : vector<16x8x128xf32>
    %cst_9 = arith.constant dense<0.000000e+00> : vector<8x128xf32>
    %10 = vector.multi_reduction <add>, %9, %cst_9 [0] : vector<16x8x128xf32> to vector<8x128xf32>
    %11 = vector.shape_cast %10 : vector<8x128xf32> to vector<1x8x128xf32>
    %c0_10 = arith.constant 0 : index
    %c0_11 = arith.constant 0 : index
    %c0_12 = arith.constant 0 : index
    %12 = vector.load %arg5[%c0_10, %c0_11, %c0_12] : memref<1x8x128xf32, #tpu.memory_space<vmem>>, vector<1x8x128xf32>
    tpu.vector_store %arg5[%c0_10, %c0_11, %c0_12], %11 {strides = array<i32>} : memref<1x8x128xf32, #tpu.memory_space<vmem>>, vector<1x8x128xf32>,
    return
  }
  func.func @transform_0(%arg0: i32) -> (i32, i32) {
    %c0_i32 = arith.constant 0 : i32
    %c0_i32_0 = arith.constant 0 : i32
    return %arg0, %c0_i32 : i32, i32
  }
  func.func @transform_1(%arg0: i32) -> (i32, i32) {
    %c0_i32 = arith.constant 0 : i32
    %c0_i32_0 = arith.constant 0 : i32
    %c0_i32_1 = arith.constant 0 : i32
    return %c0_i32, %c0_i32_0 : i32, i32
  }
  func.func @transform_2(%arg0: i32) -> (i32, i32) {
    %c0_i32 = arith.constant 0 : i32
    %c0_i32_0 = arith.constant 0 : i32
    return %arg0, %c0_i32 : i32, i32
  }
  func.func @transform_3(%arg0: i32) -> (i32, i32, i32) {
    %c0_i32 = arith.constant 0 : i32
    %c0_i32_0 = arith.constant 0 : i32
    %c0_i32_1 = arith.constant 0 : i32
    return %arg0, %c0_i32, %c0_i32_0 : i32, i32, i32
  }
  func.func @transform_4(%arg0: i32) -> (i32, i32, i32) {
    %c0_i32 = arith.constant 0 : i32
    %c0_i32_0 = arith.constant 0 : i32
    %c0_i32_1 = arith.constant 0 : i32
    return %arg0, %c0_i32, %c0_i32_0 : i32, i32, i32
  }
}

module attributes {stable_mosaic.version = 11 : i64} {
  func.func @kernel(%arg0: i32, %arg1: memref<1x8x8x128xbf16, #tpu.memory_space<vmem>>, %arg2: memref<1x128xf32, #tpu.memory_space<vmem>>, %arg3: memref<1x128xf32, #tpu.memory_space<vmem>>, %arg4: memref<9x9x128xf32, #tpu.memory_space<vmem>>, %arg5: memref<1x1x128xf32, #tpu.memory_space<vmem>>) attributes {dimension_semantics = [#tpu.dimension_semantics<parallel>], iteration_bounds = array<i64: 2>, scalar_prefetch = 0 : i64, scratch_operands = 0 : i64, tpu.core_type = #tpu.core_type<tc>, window_params = [{transform_indices = @transform_0, window_bounds = array<i64: 1, 8, 8, 128>}, {pipeline_mode = #tpu.pipeline_mode<synchronous>, transform_indices = @transform_1, window_bounds = array<i64: 1, 128>}, {pipeline_mode = #tpu.pipeline_mode<synchronous>, transform_indices = @transform_2, window_bounds = array<i64: 1, 128>}, {pipeline_mode = #tpu.pipeline_mode<synchronous>, transform_indices = @transform_3, window_bounds = array<i64: 9, 9, 128>}, {transform_indices = @transform_4, window_bounds = array<i64: 1, 1, 128>}]} {
    %c0 = arith.constant 0 : index
    %c0_0 = arith.constant 0 : index
    %0 = vector.load %arg2[%c0, %c0_0] : memref<1x128xf32, #tpu.memory_space<vmem>>, vector<1x128xf32>
    %1 = vector.shape_cast %0 : vector<1x128xf32> to vector<1x1x128xf32>
    %c0_1 = arith.constant 0 : index
    %c0_2 = arith.constant 0 : index
    %2 = vector.load %arg3[%c0_1, %c0_2] : memref<1x128xf32, #tpu.memory_space<vmem>>, vector<1x128xf32>
    %3 = vector.shape_cast %2 : vector<1x128xf32> to vector<1x1x128xf32>
    %c0_3 = arith.constant 0 : index
    %c0_4 = arith.constant 0 : index
    %c0_5 = arith.constant 0 : index
    %c0_6 = arith.constant 0 : index
    %4 = vector.load %arg1[%c0_3, %c0_4, %c0_5, %c0_6] : memref<1x8x8x128xbf16, #tpu.memory_space<vmem>>, vector<1x8x8x128xbf16>
    %5 = vector.shape_cast %4 : vector<1x8x8x128xbf16> to vector<8x8x128xbf16>
    %6 = arith.extf %5 : vector<8x8x128xbf16> to vector<8x8x128xf32>
    %7 = vector.broadcast %1 : vector<1x1x128xf32> to vector<8x8x128xf32>
    %8 = arith.mulf %6, %7 : vector<8x8x128xf32>
    %9 = vector.broadcast %3 : vector<1x1x128xf32> to vector<8x8x128xf32>
    %10 = arith.addf %8, %9 : vector<8x8x128xf32>
    %cst = arith.constant 0.000000e+00 : f32
    %11 = vector.broadcast %cst : f32 to vector<8x8x128xf32>
    %12 = arith.cmpf ogt, %10, %11 : vector<8x8x128xf32>
    %cst_7 = arith.constant 2.000000e-01 : f32
    %13 = vector.broadcast %cst_7 : f32 to vector<8x8x128xf32>
    %14 = arith.mulf %13, %10 : vector<8x8x128xf32>
    %15 = arith.select %12, %10, %14 : vector<8x8x128xi1>, vector<8x8x128xf32>
    %c0_8 = arith.constant 0 : index
    %c0_9 = arith.constant 0 : index
    %c0_10 = arith.constant 0 : index
    %16 = vector.load %arg4[%c0_8, %c0_9, %c0_10] : memref<9x9x128xf32, #tpu.memory_space<vmem>>, vector<9x9x128xf32>
    %17 = vector.extract_strided_slice %15 {offsets = [0, 0, 0], sizes = [5, 5, 128], strides = [1, 1, 1]} : vector<8x8x128xf32> to vector<5x5x128xf32>
    %18 = vector.extract_strided_slice %16 {offsets = [4, 4, 0], sizes = [5, 5, 128], strides = [1, 1, 1]} : vector<9x9x128xf32> to vector<5x5x128xf32>
    %19 = arith.mulf %17, %18 : vector<5x5x128xf32>
    %cst_11 = arith.constant dense<0.000000e+00> : vector<5x128xf32>
    %20 = vector.multi_reduction <add>, %19, %cst_11 [0] : vector<5x5x128xf32> to vector<5x128xf32>
    %cst_12 = arith.constant dense<0.000000e+00> : vector<128xf32>
    %21 = vector.multi_reduction <add>, %20, %cst_12 [0] : vector<5x128xf32> to vector<128xf32>
    %22 = vector.shape_cast %21 : vector<128xf32> to vector<1x128xf32>
    %23 = vector.shape_cast %22 : vector<1x128xf32> to vector<1x1x128xf32>
    %c0_13 = arith.constant 0 : index
    %c0_14 = arith.constant 0 : index
    %c0_15 = arith.constant 0 : index
    %24 = vector.load %arg5[%c0_13, %c0_14, %c0_15] : memref<1x1x128xf32, #tpu.memory_space<vmem>>, vector<1x1x128xf32>
    tpu.vector_store %arg5[%c0_13, %c0_14, %c0_15], %23 {strides = array<i32>} : memref<1x1x128xf32, #tpu.memory_space<vmem>>, vector<1x1x128xf32>,
    return
  }
  func.func @transform_0(%arg0: i32) -> (i32, i32, i32, i32) {
    %c0_i32 = arith.constant 0 : i32
    %c0_i32_0 = arith.constant 0 : i32
    %c0_i32_1 = arith.constant 0 : i32
    %c0_i32_2 = arith.constant 0 : i32
    return %arg0, %c0_i32, %c0_i32_0, %c0_i32_1 : i32, i32, i32, i32
  }
  func.func @transform_1(%arg0: i32) -> (i32, i32) {
    %c0_i32 = arith.constant 0 : i32
    %c0_i32_0 = arith.constant 0 : i32
    %c0_i32_1 = arith.constant 0 : i32
    return %c0_i32, %c0_i32_0 : i32, i32
  }
  func.func @transform_2(%arg0: i32) -> (i32, i32) {
    %c0_i32 = arith.constant 0 : i32
    %c0_i32_0 = arith.constant 0 : i32
    %c0_i32_1 = arith.constant 0 : i32
    return %c0_i32, %c0_i32_0 : i32, i32
  }
  func.func @transform_3(%arg0: i32) -> (i32, i32, i32) {
    %c0_i32 = arith.constant 0 : i32
    %c0_i32_0 = arith.constant 0 : i32
    %c0_i32_1 = arith.constant 0 : i32
    %c0_i32_2 = arith.constant 0 : i32
    return %c0_i32, %c0_i32_0, %c0_i32_1 : i32, i32, i32
  }
  func.func @transform_4(%arg0: i32) -> (i32, i32, i32) {
    %c0_i32 = arith.constant 0 : i32
    %c0_i32_0 = arith.constant 0 : i32
    %c0_i32_1 = arith.constant 0 : i32
    return %arg0, %c0_i32, %c0_i32_0 : i32, i32, i32
  }
}

</mosaic_0001>

<llo_original>
// kernel: qrgan_discriminator_forward.3
$region0: #{qrgan_discriminator_forward.3}
  #allocation0 [shape = 'u32[]', space=smem, size = 0x4, offset = 0x4, fixed_abs, tag = 'smem constant byte address 0x4 - core index']
  #allocation1 [shape = 'u32[144,128]{1,0:T(1,128)}', space=vmem, size = 0x12000, scoped, tag = 'internal scratch']
  %s0 = inlined_call_operand.vmem [shape: bf16[2,8,8,128], index: 0, kind: input, shape index: {}]
  %s1 = inlined_call_operand.vmem [shape: f32[1,128], index: 1, kind: input, shape index: {}]
  %s2 = inlined_call_operand.vmem [shape: f32[1,128], index: 2, kind: input, shape index: {}]
  %s3 = inlined_call_operand.vmem [shape: f32[9,9,128], index: 3, kind: input, shape index: {}]
  %s4 = inlined_call_operand.vmem [shape: f32[2,1,128], index: 4, kind: output, shape index: {}]
  %s5 = sld [smem:[#allocation0]]
  $region49: #{qrgan_discriminator_forward.3} parent=0
    _
  %s7 = ssub.s32 1, %s5
  %s8 = scalar_select 0, %s7, %s5
  loop: start=0, step=1, limit=4
  $region2: #{qrgan_discriminator_forward.3} parent=0 // loop_pre_header
    _
  $region3: #{qrgan_discriminator_forward.3} parent=0 // loop_header
    %s10 = sphi 0, %s14
    %p11 = scmp.ge.s32.totalorder %s10, 4
    %s20 = sphi 0, %s22
    %s23 = sphi 0, %s20
    %s24 = sphi 0, %s23
    %s40 = sphi 0, %s24
    %s44 = sphi 0, %s44
    %s46 = sphi 0, %s44
    %s47 = sphi 0, %s46
    %s61 = sphi 0, %s47
    %s65 = sphi 0, %s65
    %s67 = sphi 0, %s65
    %s68 = sphi 0, %s67
    %s82 = sphi 0, %s68
    %s86 = sphi 0, %s86
    %s88 = sphi 0, %s86
    %s89 = sphi 0, %s88
    %s103 = sphi 0, %s89
    %s109 = sphi 0, %s111
    %s112 = sphi 0, %s109
    %s113 = sphi 0, %s112
    %s129 = sphi 0, %s113
  $region4: #{qrgan_discriminator_forward.3} parent=0 // loop_header_branch
    %13 = sbr.rel (%p11) target = $region8
  $region5: #{qrgan_discriminator_forward.3} parent=0 // loop_body
    %s15 = ssub.s32 %s10, 1
    %s16 = ssub.s32 %s10, 2
    %s17 = sadd.s32 %s10, 1
    %s18 = ssub.s32 %s10, %s17
    %p19 = scmp.eq.s32.totalorder %s18, 0
    %s21 = sadd.s32 %s20, 1
    %s22 = scalar_select %p19, %s20, %s21
    %p25 = pneg %p19
    %p26 = scmp.eq.s32.totalorder %s10, 1
    %p27 = por %p25, %p26
    %p28 = scmp.ne.s32.totalorder %s20, %s23
    %p29 = scmp.eq.s32.totalorder %s10, 0
    %p30 = por %p28, %p29
    %p31 = scmp.ne.s32.totalorder %s20, %s23
    %p32 = scmp.eq.s32.totalorder %s15, 1
    %p33 = por %p31, %p32
    %p34 = scmp.ne.s32.totalorder %s23, %s24
    %p35 = scmp.eq.s32.totalorder %s15, 0
    %p36 = por %p34, %p35
    %p37 = scmp.ne.s32.totalorder %s23, %s24
    %p38 = scmp.eq.s32.totalorder %s16, 1
    %p39 = por %p37, %p38
    %p41 = scmp.ne.s32.totalorder %s24, %s40
    %p42 = scmp.eq.s32.totalorder %s16, 0
    %p43 = por %p41, %p42
    %s45 = sadd.s32 %s44, 1
    %p48 = scmp.eq.s32.totalorder %s10, 1
    %p49 = scmp.ne.s32.totalorder %s44, %s46
    %p50 = scmp.eq.s32.totalorder %s10, 0
    %p51 = por %p49, %p50
    %p52 = scmp.ne.s32.totalorder %s44, %s46
    %p53 = scmp.eq.s32.totalorder %s15, 1
    %p54 = por %p52, %p53
    %p55 = scmp.ne.s32.totalorder %s46, %s47
    %p56 = scmp.eq.s32.totalorder %s15, 0
    %p57 = por %p55, %p56
    %p58 = scmp.ne.s32.totalorder %s46, %s47
    %p59 = scmp.eq.s32.totalorder %s16, 1
    %p60 = por %p58, %p59
    %p62 = scmp.ne.s32.totalorder %s47, %s61
    %p63 = scmp.eq.s32.totalorder %s16, 0
    %p64 = por %p62, %p63
    %s66 = sadd.s32 %s65, 1
    %p69 = scmp.eq.s32.totalorder %s10, 1
    %p70 = scmp.ne.s32.totalorder %s65, %s67
    %p71 = scmp.eq.s32.totalorder %s10, 0
    %p72 = por %p70, %p71
    %p73 = scmp.ne.s32.totalorder %s65, %s67
    %p74 = scmp.eq.s32.totalorder %s15, 1
    %p75 = por %p73, %p74
    %p76 = scmp.ne.s32.totalorder %s67, %s68
    %p77 = scmp.eq.s32.totalorder %s15, 0
    %p78 = por %p76, %p77
    %p79 = scmp.ne.s32.totalorder %s67, %s68
    %p80 = scmp.eq.s32.totalorder %s16, 1
    %p81 = por %p79, %p80
    %p83 = scmp.ne.s32.totalorder %s68, %s82
    %p84 = scmp.eq.s32.totalorder %s16, 0
    %p85 = por %p83, %p84
    %s87 = sadd.s32 %s86, 1
    %p90 = scmp.eq.s32.totalorder %s10, 1
    %p91 = scmp.ne.s32.totalorder %s86, %s88
    %p92 = scmp.eq.s32.totalorder %s10, 0
    %p93 = por %p91, %p92
    %p94 = scmp.ne.s32.totalorder %s86, %s88
    %p95 = scmp.eq.s32.totalorder %s15, 1
    %p96 = por %p94, %p95
    %p97 = scmp.ne.s32.totalorder %s88, %s89
    %p98 = scmp.eq.s32.totalorder %s15, 0
    %p99 = por %p97, %p98
    %p100 = scmp.ne.s32.totalorder %s88, %s89
    %p101 = scmp.eq.s32.totalorder %s16, 1
    %p102 = por %p100, %p101
    %p104 = scmp.ne.s32.totalorder %s89, %s103
    %p105 = scmp.eq.s32.totalorder %s16, 0
    %p106 = por %p104, %p105
    %s107 = ssub.s32 %s10, %s17
    %p108 = scmp.eq.s32.totalorder %s107, 0
    %s110 = sadd.s32 %s109, 1
    %s111 = scalar_select %p108, %s109, %s110
    %p114 = pneg %p108
    %p115 = scmp.eq.s32.totalorder %s10, 1
    %p116 = por %p114, %p115
    %p117 = scmp.ne.s32.totalorder %s109, %s112
    %p118 = scmp.eq.s32.totalorder %s10, 0
    %p119 = por %p117, %p118
    %p120 = scmp.ne.s32.totalorder %s109, %s112
    %p121 = scmp.eq.s32.totalorder %s15, 1
    %p122 = por %p120, %p121
    %p123 = scmp.ne.s32.totalorder %s112, %s113
    %p124 = scmp.eq.s32.totalorder %s15, 0
    %p125 = por %p123, %p124
    %p126 = scmp.ne.s32.totalorder %s112, %s113
    %p127 = scmp.eq.s32.totalorder %s16, 1
    %p128 = por %p126, %p127
    %p130 = scmp.ne.s32.totalorder %s113, %s129
    %p131 = scmp.eq.s32.totalorder %s16, 0
    %p132 = por %p130, %p131
    %p133 = scmp.le.s32.totalorder 1, %s10
    %p134 = scmp.lt.s32.totalorder %s10, 3
    %p135 = pnand %p133, %p134
    %p136 = pneg %p135
    // Predicated region
    $region9: #{qrgan_discriminator_forward.3} parent=5 // pred_check
      _
    $region10: #{qrgan_discriminator_forward.3} parent=5 // pred_check_branch
      %138 = sbr.rel (%p135) target = $region12
    $region11: #{qrgan_discriminator_forward.3} parent=5 // pred_region
      %s139 = ssub.s32 %s10, 1
      // Predicated region
      $region13: #{qrgan_discriminator_forward.3} parent=11 // pred_check
        %p140 = pneg %p57
      $region14: #{qrgan_discriminator_forward.3} parent=11 // pred_check_branch
        %142 = sbr.rel (%p140) target = $region16
      $region15: #{qrgan_discriminator_forward.3} parent=11 // pred_region
        _
      $region16: #{qrgan_discriminator_forward.3} parent=11 // pred_fallthru
        _
      // Predicated region
      $region17: #{qrgan_discriminator_forward.3} parent=11 // pred_check
        %p143 = pneg %p78
      $region18: #{qrgan_discriminator_forward.3} parent=11 // pred_check_branch
        %145 = sbr.rel (%p143) target = $region20
      $region19: #{qrgan_discriminator_forward.3} parent=11 // pred_region
        _
      $region20: #{qrgan_discriminator_forward.3} parent=11 // pred_fallthru
        _
      // Predicated region
      $region21: #{qrgan_discriminator_forward.3} parent=11 // pred_check
        %p146 = pneg %p99
      $region22: #{qrgan_discriminator_forward.3} parent=11 // pred_check_branch
        %148 = sbr.rel (%p146) target = $region24
      $region23: #{qrgan_discriminator_forward.3} parent=11 // pred_region
        _
      $region24: #{qrgan_discriminator_forward.3} parent=11 // pred_fallthru
        _
    $region12: #{qrgan_discriminator_forward.3} parent=5 // pred_fallthru
      _
    %p149 = scmp.lt.s32.totalorder %s10, 2
    // Predicated region
    $region25: #{qrgan_discriminator_forward.3} parent=5 // pred_check
      %p150 = pneg %p149
    $region26: #{qrgan_discriminator_forward.3} parent=5 // pred_check_branch
      %152 = sbr.rel (%p150) target = $region28
    $region27: #{qrgan_discriminator_forward.3} parent=5 // pred_region
      // Predicated region
      $region29: #{qrgan_discriminator_forward.3} parent=27 // pred_check
        %p153 = pneg %p30
      $region30: #{qrgan_discriminator_forward.3} parent=27 // pred_check_branch
        %155 = sbr.rel (%p153) target = $region32
      $region31: #{qrgan_discriminator_forward.3} parent=27 // pred_region
        %p156 = scmp.lt.s32.totalorder %s10, 1
        %s157 = scalar_select %p156, %s10, 1
        %s158 = smul.addr %s157, 8
        %s159 = smul.addr %s158, 4
        %s160 = scalar_lea.vmem %s0, %s159
      $region32: #{qrgan_discriminator_forward.3} parent=27 // pred_fallthru
        _
    $region28: #{qrgan_discriminator_forward.3} parent=5 // pred_fallthru
      _
    %p161 = scmp.le.s32.totalorder 1, %s10
    %p162 = scmp.lt.s32.totalorder %s10, 3
    %p163 = pnand %p161, %p162
    %p164 = pneg %p163
    // Predicated region
    $region33: #{qrgan_discriminator_forward.3} parent=5 // pred_check
      _
    $region34: #{qrgan_discriminator_forward.3} parent=5 // pred_check_branch
      %166 = sbr.rel (%p163) target = $region36
    $region35: #{qrgan_discriminator_forward.3} parent=5 // pred_region
      %s167 = ssub.s32 %s10, 1
      %p168 = scmp.lt.s32.totalorder %s15, 1
      %s169 = scalar_select %p168, %s15, 1
      %s170 = smul.addr %s169, 8
      %s171 = smul.addr %s170, 4
      %s172 = scalar_lea.vmem %s0, %s171
      %p173 = pneg %p36
      %p174 = pneg %p33
      %p175 = pneg %p57
      %p176 = pneg %p54
      %p177 = pneg %p78
      %p178 = pneg %p75
      %p179 = pneg %p99
      %p180 = pneg %p96
      %p181 = pneg %p125
      %p182 = pneg %p122
      %p183 = scmp.lt.s32.totalorder %s15, 1
      %s184 = scalar_select %p183, %s15, 1
      %s185 = scalar_lea.vmem %s4, %s184
      %p186 = scmp.lt.s32.totalorder %s15, 1
      %s187 = scalar_select %p186, %s15, 1
      %s188 = smul.addr %s187, 8
      %s189 = smul.addr %s188, 4
      %s190 = scalar_lea.vmem %s0, %s189
      %p191 = scmp.lt.s32.totalorder %s15, 1
      %s192 = scalar_select %p191, %s15, 1
      %s193 = scalar_lea.vmem %s4, %s192
      %v194 = vld [vmem:[%s1] sm:$0x1]
      %v195 = vld [vmem:[%s2] sm:$0x1]
      %v196 = vld [vmem:[%s190] sm:$0xf]
      %v197 = vld [vmem:[%s190 + $0x4] sm:$0xf]
      %v198 = vld [vmem:[%s190 + $0x8] sm:$0xf]
      %v199 = vld [vmem:[%s190 + $0xc] sm:$0xf]
      %v200 = vld [vmem:[%s190 + $0x10] sm:$0xf]
      %v201 = vunpack.c.l.bf16 %v196
      %v202 = vunpack.c.l.bf16 %v197
      %v203 = vunpack.c.l.bf16 %v198
      %v204 = vunpack.c.l.bf16 %v199
      %v205 = vunpack.c.l.bf16 %v200
      %v207 = vlaneseq
      %v208 = vshrl.u32 %v207, 7
      %v209 = vsub.s32 0, %v208
      %v210 = vrot.slane %v194, %v209
      %v212 = vmul.f32 %v201, %v210
      %v213 = vmul.f32 %v202, %v210
      %v214 = vmul.f32 %v203, %v210
      %v215 = vmul.f32 %v204, %v210
      %v216 = vmul.f32 %v205, %v210
      %v218 = vlaneseq
      %v219 = vshrl.u32 %v218, 7
      %v220 = vsub.s32 0, %v219
      %v221 = vrot.slane %v195, %v220
      %v223 = vadd.f32 %v212, %v221
      %v224 = vadd.f32 %v213, %v221
      %v225 = vadd.f32 %v214, %v221
      %v226 = vadd.f32 %v215, %v221
      %v227 = vadd.f32 %v216, %v221
      %vm228 = vcmp.gt.f32.partialorder %v223, 0.0
      %vm229 = vcmp.gt.f32.partialorder %v224, 0.0
      %vm230 = vcmp.gt.f32.partialorder %v225, 0.0
      %vm231 = vcmp.gt.f32.partialorder %v226, 0.0
      %vm232 = vcmp.gt.f32.partialorder %v227, 0.0
      %v233 = vmul.f32 %v223, 0.2
      %v234 = vmul.f32 %v224, 0.2
      %v235 = vmul.f32 %v225, 0.2
      %v236 = vmul.f32 %v226, 0.2
      %v237 = vmul.f32 %v227, 0.2
      %v238 = vsel %vm228, %v223, %v233
      %v239 = vsel %vm229, %v224, %v234
      %v240 = vsel %vm230, %v225, %v235
      %v241 = vsel %vm231, %v226, %v236
      %v242 = vsel %vm232, %v227, %v237
      %v243 = vld [vmem:[%s3 + $0x40] sm:$0xff]
      %v244 = vld [vmem:[%s3 + $0x48] sm:$0x1]
      %v245 = vld [vmem:[%s3 + $0x50] sm:$0xff]
      %v246 = vld [vmem:[%s3 + $0x58] sm:$0x1]
      %v247 = vld [vmem:[%s3 + $0x60] sm:$0xff]
      %v248 = vld [vmem:[%s3 + $0x68] sm:$0x1]
      %v249 = vld [vmem:[%s3 + $0x70] sm:$0xff]
      %v250 = vld [vmem:[%s3 + $0x78] sm:$0x1]
      %v251 = vld [vmem:[%s3 + $0x80] sm:$0xff]
      %v252 = vld [vmem:[%s3 + $0x88] sm:$0x1]
      %vm263 = vcmask 1043456
      %v264 = vrot.slane %v243, 4
      %v265 = vrot.slane %v244, 4
      %v266 = vsel %vm263, %v264, %v265
      %v267 = vrot.slane %v245, 4
      %v268 = vrot.slane %v246, 4
      %v269 = vsel %vm263, %v267, %v268
      %v270 = vrot.slane %v247, 4
      %v271 = vrot.slane %v248, 4
      %v272 = vsel %vm263, %v270, %v271
      %v273 = vrot.slane %v249, 4
      %v274 = vrot.slane %v250, 4
      %v275 = vsel %vm263, %v273, %v274
      %v276 = vrot.slane %v251, 4
      %v277 = vrot.slane %v252, 4
      %v278 = vsel %vm263, %v276, %v277
      %v284 = vmul.f32 %v238, %v266
      %v285 = vmul.f32 %v239, %v269
      %v286 = vmul.f32 %v240, %v272
      %v287 = vmul.f32 %v241, %v275
      %v288 = vmul.f32 %v242, %v278
      %vm289 = vcmask 1044480
      %v290 = vsel %vm289, %v284, 0.0
      %v291 = vsel %vm289, %v285, 0.0
      %v292 = vadd.f32 %v290, %v291
      %v293 = vsel %vm289, %v286, 0.0
      %v294 = vadd.f32 %v292, %v293
      %v295 = vsel %vm289, %v287, 0.0
      %v296 = vadd.f32 %v294, %v295
      %v297 = vsel %vm289, %v288, 0.0
      %v298 = vadd.f32 %v296, %v297
      %v299 = vsel %vm289, %v298, 0.0
      %v300 = vrot.slane %v299, 4
      %v301 = vadd.f32 %v299, %v300
      %v302 = vrot.slane %v301, 2
      %v303 = vadd.f32 %v301, %v302
      %v304 = vrot.slane %v303, 1
      %v305 = vadd.f32 %v303, %v304
      %306 = vst [vmem:[%s193] sm:$0x1] %v305
      %p307 = scmp.lt.s32.totalorder %s15, 1
      %s308 = scalar_select %p307, %s15, 1
      %s309 = scalar_lea.vmem %s4, %s308
      // Predicated region
      $region37: #{qrgan_discriminator_forward.3} parent=35 // pred_check
        %p310 = pneg %p122
      $region38: #{qrgan_discriminator_forward.3} parent=35 // pred_check_branch
        %312 = sbr.rel (%p310) target = $region40
      $region39: #{qrgan_discriminator_forward.3} parent=35 // pred_region
        _
      $region40: #{qrgan_discriminator_forward.3} parent=35 // pred_fallthru
        _
    $region36: #{qrgan_discriminator_forward.3} parent=5 // pred_fallthru
      _
    %p313 = scmp.le.s32.totalorder 2, %s10
    // Predicated region
    $region41: #{qrgan_discriminator_forward.3} parent=5 // pred_check
      %p314 = pneg %p313
    $region42: #{qrgan_discriminator_forward.3} parent=5 // pred_check_branch
      %316 = sbr.rel (%p314) target = $region44
    $region43: #{qrgan_discriminator_forward.3} parent=5 // pred_region
      %s317 = ssub.s32 %s10, 2
      // Predicated region
      $region45: #{qrgan_discriminator_forward.3} parent=43 // pred_check
        %p318 = pneg %p128
      $region46: #{qrgan_discriminator_forward.3} parent=43 // pred_check_branch
        %320 = sbr.rel (%p318) target = $region48
      $region47: #{qrgan_discriminator_forward.3} parent=43 // pred_region
        %p321 = scmp.lt.s32.totalorder %s16, 1
        %s322 = scalar_select %p321, %s16, 1
        %s323 = scalar_lea.vmem %s4, %s322
      $region48: #{qrgan_discriminator_forward.3} parent=43 // pred_fallthru
        _
    $region44: #{qrgan_discriminator_forward.3} parent=5 // pred_fallthru
      _
  $region6: #{qrgan_discriminator_forward.3} parent=0 // loop_footer
    %s14 = sadd.s32 1, %s10
  $region7: #{qrgan_discriminator_forward.3} parent=0 // loop_footer_branch
    %9 = sbr.rel target = $region3
  $region8: #{qrgan_discriminator_forward.3} parent=0 // loop_exit
    _

// kernel: qrgan_discriminator_forward.2
$region0: #{qrgan_discriminator_forward.2}
  #allocation0 [shape = 'u32[]', space=smem, size = 0x4, offset = 0x4, fixed_abs, tag = 'smem constant byte address 0x4 - core index']
  #allocation1 [shape = 'u32[144,128]{1,0:T(1,128)}', space=vmem, size = 0x12000, scoped, tag = 'internal scratch']
  %s0 = inlined_call_operand.vmem [shape: bf16[128,36], index: 0, kind: input, shape index: {}]
  %s1 = inlined_call_operand.vmem [shape: bf16[36,128], index: 1, kind: input, shape index: {}]
  %s2 = inlined_call_operand.vmem [shape: bf16[128,128], index: 2, kind: output, shape index: {0}]
  %s3 = inlined_call_operand.vmem [shape: f32[1,8,128], index: 3, kind: output, shape index: {1}]
  %s4 = inlined_call_operand.vmem [shape: f32[1,8,128], index: 4, kind: output, shape index: {2}]
  %5 = xla_tuple %s2, %s3, %s4
  %s6 = sld [smem:[#allocation0]]
  $region34: #{qrgan_discriminator_forward.2} parent=0
    _
  %s8 = ssub.s32 1, %s6
  %s9 = scalar_select 0, %s8, %s6
  // Predicated region
  $region2: #{qrgan_discriminator_forward.2} parent=0 // pred_check
    _
  $region3: #{qrgan_discriminator_forward.2} parent=0 // pred_check_branch
    %11 = sbr.rel (0) target = $region5
  $region4: #{qrgan_discriminator_forward.2} parent=0 // pred_region
    _
  $region5: #{qrgan_discriminator_forward.2} parent=0 // pred_fallthru
    _
  // Predicated region
  $region6: #{qrgan_discriminator_forward.2} parent=0 // pred_check
    _
  $region7: #{qrgan_discriminator_forward.2} parent=0 // pred_check_branch
    %13 = sbr.rel (0) target = $region9
  $region8: #{qrgan_discriminator_forward.2} parent=0 // pred_region
    _
  $region9: #{qrgan_discriminator_forward.2} parent=0 // pred_fallthru
    _
  %v15 = vld [vmem:[%s0] sm:$0xf]
  %v16 = vld [vmem:[%s0 + $0x4] sm:$0xf]
  %v17 = vld [vmem:[%s0 + $0x8] sm:$0xf]
  %v18 = vld [vmem:[%s0 + $0xc] sm:$0xf]
  %v19 = vld [vmem:[%s0 + $0x10] sm:$0xf]
  %v20 = vld [vmem:[%s0 + $0x14] sm:$0xf]
  %v21 = vld [vmem:[%s0 + $0x18] sm:$0xf]
  %v22 = vld [vmem:[%s0 + $0x1c] sm:$0xf]
  %v23 = vld [vmem:[%s0 + $0x20] sm:$0xf]
  %v24 = vld [vmem:[%s0 + $0x24] sm:$0xf]
  %v25 = vld [vmem:[%s0 + $0x28] sm:$0xf]
  %v26 = vld [vmem:[%s0 + $0x2c] sm:$0xf]
  %v27 = vld [vmem:[%s0 + $0x30] sm:$0xf]
  %v28 = vld [vmem:[%s0 + $0x34] sm:$0xf]
  %v29 = vld [vmem:[%s0 + $0x38] sm:$0xf]
  %v30 = vld [vmem:[%s0 + $0x3c] sm:$0xf]
  %v31 = vld [vmem:[%s1] sm:$0xf]
  %v32 = vld [vmem:[%s1 + $0x4] sm:$0xf]
  %v33 = vld [vmem:[%s1 + $0x8] sm:$0xf]
  %v34 = vld [vmem:[%s1 + $0xc] sm:$0xf]
  %v35 = vld [vmem:[%s1 + $0x10] sm:$0x3]
  %v52 = vunpack.c.l.b16 %v15
  %v53 = vunpack.c.l.b16 %v16
  %v54 = vunpack.c.l.b16 %v17
  %v55 = vunpack.c.l.b16 %v18
  %v56 = vunpack.c.l.b16 %v19
  %v57 = vunpack.c.l.b16 %v20
  %v58 = vunpack.c.l.b16 %v21
  %v59 = vunpack.c.l.b16 %v22
  %v60 = vunpack.c.l.b16 %v23
  %v61 = vunpack.c.l.b16 %v24
  %v62 = vunpack.c.l.b16 %v25
  %v63 = vunpack.c.l.b16 %v26
  %v64 = vunpack.c.l.b16 %v27
  %v65 = vunpack.c.l.b16 %v28
  %v66 = vunpack.c.l.b16 %v29
  %v67 = vunpack.c.l.b16 %v30
  %v68 = vpack.c.b16 %v53, %v52
  %v69 = vpack.c.b16 %v55, %v54
  %v70 = vpack.c.b16 %v57, %v56
  %v71 = vpack.c.b16 %v59, %v58
  %v72 = vpack.c.b16 %v61, %v60
  %v73 = vpack.c.b16 %v63, %v62
  %v74 = vpack.c.b16 %v65, %v64
  %v75 = vpack.c.b16 %v67, %v66
  %v81 = vunpack.c.l.b16 %v31
  %v82 = vunpack.c.l.b16 %v32
  %v83 = vunpack.c.l.b16 %v33
  %v84 = vunpack.c.l.b16 %v34
  %v85 = vunpack.c.l.b16 %v35
  %v86 = vpack.c.b16 %v82, %v81
  %v87 = vpack.c.b16 %v84, %v83
  %v88 = vpack.c.b16 %v85, %v85
  %vm91 = vcmask 293888
  %v93 = vsel %vm91, %v68, 0
  %v96 = vsel %vm91, %v69, 0
  %v99 = vsel %vm91, %v70, 0
  %v102 = vsel %vm91, %v71, 0
  %v105 = vsel %vm91, %v72, 0
  %v108 = vsel %vm91, %v73, 0
  %v111 = vsel %vm91, %v74, 0
  %v114 = vsel %vm91, %v75, 0
  %vm116 = vcmask 1041408
  %v118 = vsel %vm116, %v88, 0
  %120 = vmatprep.subr.bf16.mxu0 0
  %121 = vmatpush1.bf16.msra.mxu0 %v86
  %122 = vmatprep.subr.bf16.mxu0 0
  %123 = vmatpush1.bf16.msra.mxu0 %v87
  %124 = vmatprep.subr.bf16.mxu0 0
  %125 = vmatpush1.bf16.msra.mxu0 %v118
  %126 = vmatprep.subr.bf16.mxu0 0
  %127 = vmatpush1.bf16.msra.mxu0 0
  %128 = vmatprep.subr.bf16.mxu0 0
  %129 = vmatpush1.bf16.msra.mxu0 0
  %130 = vmatprep.subr.bf16.mxu0 0
  %131 = vmatpush1.bf16.msra.mxu0 0
  %132 = vmatprep.subr.bf16.mxu0 0
  %133 = vmatpush1.bf16.msra.mxu0 0
  %134 = vmatprep.subr.bf16.mxu0 0
  %135 = vmatpush1.bf16.msra.mxu0 0
  %136 = vmatprep.subr.bf16.mxu0 0
  %137 = vmatpush1.bf16.msra.mxu0 0
  %138 = vmatprep.subr.bf16.mxu0 0
  %139 = vmatpush1.bf16.msra.mxu0 0
  %140 = vmatprep.subr.bf16.mxu0 0
  %141 = vmatpush1.bf16.msra.mxu0 0
  %142 = vmatprep.subr.bf16.mxu0 0
  %143 = vmatpush1.bf16.msra.mxu0 0
  %144 = vmatprep.subr.bf16.mxu0 0
  %145 = vmatpush1.bf16.msra.mxu0 0
  %146 = vmatprep.subr.bf16.mxu0 0
  %147 = vmatpush1.bf16.msra.mxu0 0
  %148 = vmatprep.subr.bf16.mxu0 0
  %149 = vmatpush1.bf16.msra.mxu0 0
  %150 = vmatprep.subr.bf16.mxu0 0
  %151 = vmatpush1.bf16.msra.mxu0 0
  %152 = vmatprep.mubr.bf16.mxu0 0
  %153 = vmatmul.mubr.bf16.gmra.mrb[0].mxu0 %v93
  %v154 = vpop.f32.mrb[0].mxu0
  %v155 = vadd.f32 0.0, %v154
  %v156 = vpop.f32.mrb[0].mxu0
  %v157 = vpop.f32.mrb[0].mxu0
  %v158 = vadd.f32 0.0, %v157
  %v159 = vpop.f32.mrb[0].mxu0
  %160 = vmatprep.mubr.bf16.mxu0 0
  %161 = vmatmul.mubr.bf16.gmra.mrb[0].mxu0 %v96
  %v162 = vpop.f32.mrb[0].mxu0
  %v163 = vadd.f32 0.0, %v162
  %v164 = vpop.f32.mrb[0].mxu0
  %v165 = vpop.f32.mrb[0].mxu0
  %v166 = vadd.f32 0.0, %v165
  %v167 = vpop.f32.mrb[0].mxu0
  %168 = vmatprep.mubr.bf16.mxu0 0
  %169 = vmatmul.mubr.bf16.gmra.mrb[0].mxu0 %v99
  %v170 = vpop.f32.mrb[0].mxu0
  %v171 = vadd.f32 0.0, %v170
  %v172 = vpop.f32.mrb[0].mxu0
  %v173 = vpop.f32.mrb[0].mxu0
  %v174 = vadd.f32 0.0, %v173
  %v175 = vpop.f32.mrb[0].mxu0
  %176 = vmatprep.mubr.bf16.mxu0 0
  %177 = vmatmul.mubr.bf16.gmra.mrb[0].mxu0 %v102
  %v178 = vpop.f32.mrb[0].mxu0
  %v179 = vadd.f32 0.0, %v178
  %v180 = vpop.f32.mrb[0].mxu0
  %v181 = vpop.f32.mrb[0].mxu0
  %v182 = vadd.f32 0.0, %v181
  %v183 = vpop.f32.mrb[0].mxu0
  %184 = vmatprep.mubr.bf16.mxu0 0
  %185 = vmatmul.mubr.bf16.gmra.mrb[0].mxu0 %v105
  %v186 = vpop.f32.mrb[0].mxu0
  %v187 = vadd.f32 0.0, %v186
  %v188 = vpop.f32.mrb[0].mxu0
  %v189 = vpop.f32.mrb[0].mxu0
  %v190 = vadd.f32 0.0, %v189
  %v191 = vpop.f32.mrb[0].mxu0
  %192 = vmatprep.mubr.bf16.mxu0 0
  %193 = vmatmul.mubr.bf16.gmra.mrb[0].mxu0 %v108
  %v194 = vpop.f32.mrb[0].mxu0
  %v195 = vadd.f32 0.0, %v194
  %v196 = vpop.f32.mrb[0].mxu0
  %v197 = vpop.f32.mrb[0].mxu0
  %v198 = vadd.f32 0.0, %v197
  %v199 = vpop.f32.mrb[0].mxu0
  %200 = vmatprep.mubr.bf16.mxu0 0
  %201 = vmatmul.mubr.bf16.gmra.mrb[0].mxu0 %v111
  %v202 = vpop.f32.mrb[0].mxu0
  %v203 = vadd.f32 0.0, %v202
  %v204 = vpop.f32.mrb[0].mxu0
  %v205 = vpop.f32.mrb[0].mxu0
  %v206 = vadd.f32 0.0, %v205
  %v207 = vpop.f32.mrb[0].mxu0
  %208 = vmatprep.mubr.bf16.mxu0 0
  %209 = vmatmul.mubr.bf16.gmra.mrb[0].mxu0 %v114
  %v210 = vpop.f32.mrb[0].mxu0
  %v211 = vadd.f32 0.0, %v210
  %v212 = vpop.f32.mrb[0].mxu0
  %v213 = vpop.f32.mrb[0].mxu0
  %v214 = vadd.f32 0.0, %v213
  %v215 = vpop.f32.mrb[0].mxu0
  %216 = vdwg.mxu0
  %v217 = vpack.c.bf16 %v158, %v155
  %v218 = vpack.c.bf16 %v166, %v163
  %v219 = vpack.c.bf16 %v174, %v171
  %v220 = vpack.c.bf16 %v182, %v179
  %v221 = vpack.c.bf16 %v190, %v187
  %v222 = vpack.c.bf16 %v198, %v195
  %v223 = vpack.c.bf16 %v206, %v203
  %v224 = vpack.c.bf16 %v214, %v211
  %v233 = vunpack.c.l.b16 %v217
  %v234 = vunpack.c.h.b16 %v217
  %v235 = vunpack.c.l.b16 %v218
  %v236 = vunpack.c.h.b16 %v218
  %v237 = vunpack.c.l.b16 %v219
  %v238 = vunpack.c.h.b16 %v219
  %v239 = vunpack.c.l.b16 %v220
  %v240 = vunpack.c.h.b16 %v220
  %v241 = vunpack.c.l.b16 %v221
  %v242 = vunpack.c.h.b16 %v221
  %v243 = vunpack.c.l.b16 %v222
  %v244 = vunpack.c.h.b16 %v222
  %v245 = vunpack.c.l.b16 %v223
  %v246 = vunpack.c.h.b16 %v223
  %v247 = vunpack.c.l.b16 %v224
  %v248 = vunpack.c.h.b16 %v224
  %v249 = vpack.c.b16 %v233, %v233
  %v250 = vpack.c.b16 %v234, %v234
  %v251 = vpack.c.b16 %v235, %v235
  %v252 = vpack.c.b16 %v236, %v236
  %v253 = vpack.c.b16 %v237, %v237
  %v254 = vpack.c.b16 %v238, %v238
  %v255 = vpack.c.b16 %v239, %v239
  %v256 = vpack.c.b16 %v240, %v240
  %v257 = vpack.c.b16 %v241, %v241
  %v258 = vpack.c.b16 %v242, %v242
  %v259 = vpack.c.b16 %v243, %v243
  %v260 = vpack.c.b16 %v244, %v244
  %v261 = vpack.c.b16 %v245, %v245
  %v262 = vpack.c.b16 %v246, %v246
  %v263 = vpack.c.b16 %v247, %v247
  %v264 = vpack.c.b16 %v248, %v248
  %281 = vst [vmem:[%s2] sm:$0xf] %v249
  %282 = vst [vmem:[%s2 + $0x4] sm:$0xf] %v250
  %283 = vst [vmem:[%s2 + $0x8] sm:$0xf] %v251
  %284 = vst [vmem:[%s2 + $0xc] sm:$0xf] %v252
  %285 = vst [vmem:[%s2 + $0x10] sm:$0xf] %v253
  %286 = vst [vmem:[%s2 + $0x14] sm:$0xf] %v254
  %287 = vst [vmem:[%s2 + $0x18] sm:$0xf] %v255
  %288 = vst [vmem:[%s2 + $0x1c] sm:$0xf] %v256
  %289 = vst [vmem:[%s2 + $0x20] sm:$0xf] %v257
  %290 = vst [vmem:[%s2 + $0x24] sm:$0xf] %v258
  %291 = vst [vmem:[%s2 + $0x28] sm:$0xf] %v259
  %292 = vst [vmem:[%s2 + $0x2c] sm:$0xf] %v260
  %293 = vst [vmem:[%s2 + $0x30] sm:$0xf] %v261
  %294 = vst [vmem:[%s2 + $0x34] sm:$0xf] %v262
  %295 = vst [vmem:[%s2 + $0x38] sm:$0xf] %v263
  %296 = vst [vmem:[%s2 + $0x3c] sm:$0xf] %v264
  %v297 = vadd.f32 %v155, %v158
  %v298 = vadd.f32 %v297, %v163
  %v299 = vadd.f32 %v298, %v166
  %v300 = vadd.f32 %v299, %v171
  %v301 = vadd.f32 %v300, %v174
  %v302 = vadd.f32 %v301, %v179
  %v303 = vadd.f32 %v302, %v182
  %v304 = vadd.f32 %v303, %v187
  %v305 = vadd.f32 %v304, %v190
  %v306 = vadd.f32 %v305, %v195
  %v307 = vadd.f32 %v306, %v198
  %v308 = vadd.f32 %v307, %v203
  %v309 = vadd.f32 %v308, %v206
  %v310 = vadd.f32 %v309, %v211
  %v311 = vadd.f32 %v310, %v214
  %312 = vst [vmem:[%s3] sm:$0xff] %v311
  %v313 = vmul.f32 %v155, %v155
  %v314 = vmul.f32 %v158, %v158
  %v315 = vmul.f32 %v163, %v163
  %v316 = vmul.f32 %v166, %v166
  %v317 = vmul.f32 %v171, %v171
  %v318 = vmul.f32 %v174, %v174
  %v319 = vmul.f32 %v179, %v179
  %v320 = vmul.f32 %v182, %v182
  %v321 = vmul.f32 %v187, %v187
  %v322 = vmul.f32 %v190, %v190
  %v323 = vmul.f32 %v195, %v195
  %v324 = vmul.f32 %v198, %v198
  %v325 = vmul.f32 %v203, %v203
  %v326 = vmul.f32 %v206, %v206
  %v327 = vmul.f32 %v211, %v211
  %v328 = vmul.f32 %v214, %v214
  %v329 = vadd.f32 %v313, %v314
  %v330 = vadd.f32 %v329, %v315
  %v331 = vadd.f32 %v330, %v316
  %v332 = vadd.f32 %v331, %v317
  %v333 = vadd.f32 %v332, %v318
  %v334 = vadd.f32 %v333, %v319
  %v335 = vadd.f32 %v334, %v320
  %v336 = vadd.f32 %v335, %v321
  %v337 = vadd.f32 %v336, %v322
  %v338 = vadd.f32 %v337, %v323
  %v339 = vadd.f32 %v338, %v324
  %v340 = vadd.f32 %v339, %v325
  %v341 = vadd.f32 %v340, %v326
  %v342 = vadd.f32 %v341, %v327
  %v343 = vadd.f32 %v342, %v328
  %344 = vst [vmem:[%s4] sm:$0xff] %v343
  // Predicated region
  $region10: #{qrgan_discriminator_forward.2} parent=0 // pred_check
    _
  $region11: #{qrgan_discriminator_forward.2} parent=0 // pred_check_branch
    %346 = sbr.rel (0) target = $region13
  $region12: #{qrgan_discriminator_forward.2} parent=0 // pred_region
    _
  $region13: #{qrgan_discriminator_forward.2} parent=0 // pred_fallthru
    _
  // Predicated region
  $region14: #{qrgan_discriminator_forward.2} parent=0 // pred_check
    _
  $region15: #{qrgan_discriminator_forward.2} parent=0 // pred_check_branch
    %348 = sbr.rel (0) target = $region17
  $region16: #{qrgan_discriminator_forward.2} parent=0 // pred_region
    _
  $region17: #{qrgan_discriminator_forward.2} parent=0 // pred_fallthru
    _
  // Predicated region
  $region18: #{qrgan_discriminator_forward.2} parent=0 // pred_check
    _
  $region19: #{qrgan_discriminator_forward.2} parent=0 // pred_check_branch
    %350 = sbr.rel (0) target = $region21
  $region20: #{qrgan_discriminator_forward.2} parent=0 // pred_region
    _
  $region21: #{qrgan_discriminator_forward.2} parent=0 // pred_fallthru
    _
  // Predicated region
  $region22: #{qrgan_discriminator_forward.2} parent=0 // pred_check
    _
  $region23: #{qrgan_discriminator_forward.2} parent=0 // pred_check_branch
    %352 = sbr.rel (0) target = $region25
  $region24: #{qrgan_discriminator_forward.2} parent=0 // pred_region
    _
  $region25: #{qrgan_discriminator_forward.2} parent=0 // pred_fallthru
    _
  // Predicated region
  $region26: #{qrgan_discriminator_forward.2} parent=0 // pred_check
    _
  $region27: #{qrgan_discriminator_forward.2} parent=0 // pred_check_branch
    %354 = sbr.rel (0) target = $region29
  $region28: #{qrgan_discriminator_forward.2} parent=0 // pred_region
    _
  $region29: #{qrgan_discriminator_forward.2} parent=0 // pred_fallthru
    _
  // Predicated region
  $region30: #{qrgan_discriminator_forward.2} parent=0 // pred_check
    _
  $region31: #{qrgan_discriminator_forward.2} parent=0 // pred_check_branch
    %356 = sbr.rel (0) target = $region33
  $region32: #{qrgan_discriminator_forward.2} parent=0 // pred_region
    _
  $region33: #{qrgan_discriminator_forward.2} parent=0 // pred_fallthru
    _

</llo_original>
